<compile_context>
chip_gen: v7x
topology: tpu7x:2x2x1
jax: 0.10.0
libtpu: 0.0.40
codegen_flags: <defaults>
</compile_context>

<pallas_src>
import jax
import jax.numpy as jnp
from jax import lax
from jax.experimental import pallas as pl


def _linear_attention_kernel(kq_ref, w_ref, b_ref, noise_ref, out_ref):
    """Single-invocation kernel (no grid); the whole problem is resident in VMEM.

    kq_ref:    (B*Nk + B*Nq, H)  all K rows first (so both row blocks start 8-aligned
                                 at these shapes), then all Q rows
    w_ref:     (H, H)            torch nn.Linear weight, layout (out_features, in_features)
    b_ref:     (1, H)            bias
    noise_ref: (2, B, Nq, Nk)    uniforms in [0,1): [0] -> dropout, [1] -> Gumbel
    out_ref:   (B, Nq, Nk)       gumbel_softmax(dropout(Q'K'^T, 0.1), tau=1, dim=-1)
    """
    B, Nq, Nk = out_ref.shape
    H = kq_ref.shape[-1]
    k_rows = B * Nk

    x = kq_ref[...]
    w = w_ref[...]
    bias = b_ref[...]

    # Shared nn.Linear + ReLU for both K and Q in ONE fused MXU push:
    #   proj = x @ W.T + b   (contract x dim 1 with W dim 1 -> no transpose materialized)
    proj = lax.dot_general(x, w, (((1,), (1,)), ((), ())),
                           preferred_element_type=jnp.float32)
    proj = jnp.maximum(proj + bias, 0.0)

    kp = proj[:k_rows].reshape(B, Nk, H)     # (B, Nk, H)
    qp = proj[k_rows:].reshape(B, Nq, H)     # (B, Nq, H)

    # S[b] = Q'[b] @ K'[b]^T — batched dot_general contracting the last dims directly
    # (no explicit kp.T, so no XLU transpose / extra VMEM copy).
    s = lax.dot_general(qp, kp, (((2,), (2,)), ((0,), (0,))),
                        preferred_element_type=jnp.float32)       # (B, Nq, Nk)

    # F.dropout(p=0.1, training=True): dropped logits become exact zeros (NOT -inf)
    # before gumbel_softmax — this intentionally reproduces the PyTorch reference,
    # so dropped entries still receive softmax mass.
    keep = noise_ref[0] >= 0.1
    s = jnp.where(keep, s * (1.0 / 0.9), 0.0)

    # F.gumbel_softmax(logits, tau=1, hard=False, dim=-1) = softmax(logits + Gumbel(0,1)).
    u = jnp.maximum(noise_ref[1], 1e-9)      # guard log(0)
    logits = s + (-jnp.log(-jnp.log(u)))
    m = jnp.max(logits, axis=-1, keepdims=True)
    e = jnp.exp(logits - m)
    out_ref[...] = e / jnp.sum(e, axis=-1, keepdims=True)


@jax.jit
def linear_attention(Q, K, W, bias, key):
    """Q: (B, Nq, H), K: (B, Nk, H), W: (H, H) torch layout (out,in), bias: (1, H)."""
    B, Nq, H = Q.shape
    _, Nk, _ = K.shape

    # Fuse both shared-Linear projections into a single matmul operand.
    # K rows first so that both the K block (offset 0) and the Q block
    # (offset B*Nk, a multiple of 8 here) start sublane-aligned inside the kernel.
    kq = jnp.concatenate([K.reshape(B * Nk, H), Q.reshape(B * Nq, H)], axis=0)

    # One random draw feeds both the dropout keep-mask and the Gumbel noise.
    # Drawn outside the kernel because the TPU hardware PRNG primitives
    # (pltpu.prng_seed / prng_random_bits) do not lower in interpret mode.
    noise = jax.random.uniform(key, (2, B, Nq, Nk), jnp.float32)

    out = pl.pallas_call(
        _linear_attention_kernel,
        out_shape=jax.ShapeDtypeStruct((B, Nq, Nk), jnp.float32),
        # No grid: a single invocation with all operands resident in VMEM.
        # This removes all per-grid-step pipeline overhead and fetches W/bias once.
        # TODO(synk): if Nk/H grow to graph sizes, tile Nk on a ("parallel",) grid
        # axis (2 TCs on v7x), pad H/Nk to multiples of 128 for lane-dense
        # loads/stores, use bf16 MXU inputs with f32 accumulation on v6e/v7x, and
        # re-derive VMEM tile sizes against v7x's 64 MiB VMEM.
    )(kq, W, bias, noise)

    # torch applies .squeeze(dim=1) before gumbel_softmax; the softmax axis
    # (last dim, Nk) is the same either way, so the squeeze commutes and is applied here.
    if Nq == 1:
        out = jnp.squeeze(out, axis=1)
    return out


if __name__ == "__main__":
    B, Nq, Nk, H = 2, 1, 8, 32

    key = jax.random.PRNGKey(0)
    kq_key, kk_key, kw_key, kb_key, kn_key = jax.random.split(key, 5)

    # Inputs (batch, seq, hidden).
    Q = jax.random.normal(kq_key, (B, Nq, H), dtype=jnp.float32)
    K = jax.random.normal(kk_key, (B, Nk, H), dtype=jnp.float32)

    # Deterministic nn.Linear(H, H) parameters, torch layout (out_features, in_features),
    # torch-style uniform(-1/sqrt(H), 1/sqrt(H)) init. No host-side W.T is made.
    bound = 1.0 / (H ** 0.5)
    W = jax.random.uniform(kw_key, (H, H), jnp.float32, -bound, bound)
    bias = jax.random.uniform(kb_key, (1, H), jnp.float32, -bound, bound)

    attn = linear_attention(Q, K, W, bias, kn_key)
    attn = jax.block_until_ready(attn)

    assert attn.shape == (B, Nk), attn.shape
    assert bool(jnp.all(jnp.isfinite(attn)))
    assert bool(jnp.allclose(jnp.sum(attn, axis=-1), 1.0, atol=1e-3))
    print("KERNEL_OK")
</pallas_src>

<mosaic_0001>
module attributes {stable_mosaic.version = 11 : i64} {
  func.func @_linear_attention_kernel(%arg0: memref<18x32xf32, #tpu.memory_space<vmem>>, %arg1: memref<32x32xf32, #tpu.memory_space<vmem>>, %arg2: memref<1x32xf32, #tpu.memory_space<vmem>>, %arg3: memref<2x2x1x8xf32, #tpu.memory_space<vmem>>, %arg4: memref<2x1x8xf32, #tpu.memory_space<vmem>>) attributes {dimension_semantics = [], scalar_prefetch = 0 : i64, scratch_operands = 0 : i64, tpu.core_type = #tpu.core_type<tc>} {
    %c0 = arith.constant 0 : index
    %c0_0 = arith.constant 0 : index
    %0 = vector.load %arg0[%c0, %c0_0] : memref<18x32xf32, #tpu.memory_space<vmem>>, vector<18x32xf32>
    %c0_1 = arith.constant 0 : index
    %c0_2 = arith.constant 0 : index
    %1 = vector.load %arg1[%c0_1, %c0_2] : memref<32x32xf32, #tpu.memory_space<vmem>>, vector<32x32xf32>
    %c0_3 = arith.constant 0 : index
    %c0_4 = arith.constant 0 : index
    %2 = vector.load %arg2[%c0_3, %c0_4] : memref<1x32xf32, #tpu.memory_space<vmem>>, vector<1x32xf32>
    %cst = arith.constant dense<0.000000e+00> : vector<18x32xf32>
    %3 = tpu.matmul %0, %1, %cst {dimension_numbers = #tpu.dot_dimension_numbers<[1], [1], [0], [0], [0, 0, 1, 0], [], []>} : vector<18x32xf32>, vector<32x32xf32>, vector<18x32xf32> -> vector<18x32xf32>
    %4 = vector.broadcast %2 : vector<1x32xf32> to vector<18x32xf32>
    %5 = arith.addf %3, %4 : vector<18x32xf32>
    %cst_5 = arith.constant 0.000000e+00 : f32
    %6 = vector.broadcast %cst_5 : f32 to vector<18x32xf32>
    %7 = arith.maximumf %5, %6 : vector<18x32xf32>
    %8 = vector.extract_strided_slice %7 {offsets = [0, 0], sizes = [16, 32], strides = [1, 1]} : vector<18x32xf32> to vector<16x32xf32>
    %9 = vector.shape_cast %8 : vector<16x32xf32> to vector<2x8x32xf32>
    %10 = vector.extract_strided_slice %7 {offsets = [16, 0], sizes = [2, 32], strides = [1, 1]} : vector<18x32xf32> to vector<2x32xf32>
    %11 = vector.shape_cast %10 : vector<2x32xf32> to vector<2x1x32xf32>
    %cst_6 = arith.constant dense<0.000000e+00> : vector<2x1x8xf32>
    %12 = tpu.matmul %11, %9, %cst_6 {dimension_numbers = #tpu.dot_dimension_numbers<[2], [2], [1], [1], [0, 0, 0, 1, 1, 1], [0], [0]>} : vector<2x1x32xf32>, vector<2x8x32xf32>, vector<2x1x8xf32> -> vector<2x1x8xf32>
    %c0_7 = arith.constant 0 : index
    %c0_8 = arith.constant 0 : index
    %c0_9 = arith.constant 0 : index
    %c0_10 = arith.constant 0 : index
    %13 = vector.load %arg3[%c0_7, %c0_8, %c0_9, %c0_10] : memref<2x2x1x8xf32, #tpu.memory_space<vmem>>, vector<1x2x1x8xf32>
    %14 = vector.shape_cast %13 : vector<1x2x1x8xf32> to vector<2x1x8xf32>
    %cst_11 = arith.constant 1.000000e-01 : f32
    %15 = vector.broadcast %cst_11 : f32 to vector<2x1x8xf32>
    %16 = arith.cmpf oge, %14, %15 : vector<2x1x8xf32>
    %cst_12 = arith.constant 1.11111116 : f32
    %17 = vector.broadcast %cst_12 : f32 to vector<2x1x8xf32>
    %18 = arith.mulf %12, %17 : vector<2x1x8xf32>
    %cst_13 = arith.constant 0.000000e+00 : f32
    %19 = vector.broadcast %cst_13 : f32 to vector<2x1x8xf32>
    %20 = arith.select %16, %18, %19 : vector<2x1x8xi1>, vector<2x1x8xf32>
    %c1 = arith.constant 1 : index
    %c0_14 = arith.constant 0 : index
    %c0_15 = arith.constant 0 : index
    %c0_16 = arith.constant 0 : index
    %21 = vector.load %arg3[%c1, %c0_14, %c0_15, %c0_16] : memref<2x2x1x8xf32, #tpu.memory_space<vmem>>, vector<1x2x1x8xf32>
    %22 = vector.shape_cast %21 : vector<1x2x1x8xf32> to vector<2x1x8xf32>
    %cst_17 = arith.constant 9.99999971E-10 : f32
    %23 = vector.broadcast %cst_17 : f32 to vector<2x1x8xf32>
    %24 = arith.maximumf %22, %23 : vector<2x1x8xf32>
    %25 = math.log %24 : vector<2x1x8xf32>
    %cst_18 = arith.constant 0.000000e+00 : f32
    %26 = vector.broadcast %cst_18 : f32 to vector<2x1x8xf32>
    %27 = arith.subf %26, %25 : vector<2x1x8xf32>
    %28 = math.log %27 : vector<2x1x8xf32>
    %cst_19 = arith.constant 0.000000e+00 : f32
    %29 = vector.broadcast %cst_19 : f32 to vector<2x1x8xf32>
    %30 = arith.subf %29, %28 : vector<2x1x8xf32>
    %31 = arith.addf %20, %30 : vector<2x1x8xf32>
    %cst_20 = arith.constant dense<0xFF800000> : vector<2x1xf32>
    %32 = vector.multi_reduction <maximumf>, %31, %cst_20 [2] : vector<2x1x8xf32> to vector<2x1xf32>
    %33 = vector.shape_cast %32 : vector<2x1xf32> to vector<2x1x1xf32>
    %34 = vector.broadcast %33 : vector<2x1x1xf32> to vector<2x1x8xf32>
    %35 = arith.subf %31, %34 : vector<2x1x8xf32>
    %36 = math.exp %35 : vector<2x1x8xf32>
    %cst_21 = arith.constant dense<0.000000e+00> : vector<2x1xf32>
    %37 = vector.multi_reduction <add>, %36, %cst_21 [2] : vector<2x1x8xf32> to vector<2x1xf32>
    %38 = vector.shape_cast %37 : vector<2x1xf32> to vector<2x1x1xf32>
    %39 = vector.broadcast %38 : vector<2x1x1xf32> to vector<2x1x8xf32>
    %40 = arith.divf %36, %39 : vector<2x1x8xf32>
    %c0_22 = arith.constant 0 : index
    %c0_23 = arith.constant 0 : index
    %c0_24 = arith.constant 0 : index
    %41 = vector.load %arg4[%c0_22, %c0_23, %c0_24] : memref<2x1x8xf32, #tpu.memory_space<vmem>>, vector<2x1x8xf32>
    tpu.vector_store %arg4[%c0_22, %c0_23, %c0_24], %40 {strides = array<i32>} : memref<2x1x8xf32, #tpu.memory_space<vmem>>, vector<2x1x8xf32>,
    return
  }
}

</mosaic_0001>

<llo_original>
// kernel: linear_attention.1
$region0: #{linear_attention.1}
  #allocation0 [shape = 'u32[]', space=smem, size = 0x4, offset = 0x4, fixed_abs, tag = 'smem constant byte address 0x4 - core index']
  #allocation1 [shape = 'u32[144,128]{1,0:T(1,128)}', space=vmem, size = 0x12000, scoped, tag = 'internal scratch']
  %s0 = inlined_call_operand.vmem [shape: f32[18,32], index: 0, kind: input, shape index: {}]
  %s1 = inlined_call_operand.vmem [shape: f32[32,32], index: 1, kind: input, shape index: {}]
  %s2 = inlined_call_operand.vmem [shape: f32[1,32], index: 2, kind: input, shape index: {}]
  %s3 = inlined_call_operand.vmem [shape: f32[2,2,1,8], index: 3, kind: input, shape index: {}]
  %s4 = inlined_call_operand.hbm [shape: f32[2,1,8], index: 4, kind: output, shape index: {}]
  %s5 = sld [smem:[#allocation0]]
  $region26: #{linear_attention.1} parent=0
    _
  %s7 = ssub.s32 1, %s5
  %s8 = scalar_select 0, %s7, %s5
  $region1: #{linear_attention.1} parent=0
    #allocation2 [shape = 'u8[1024]{0}', space=vmem, size = 0x400, scoped, tag = 'output window, operand 0, single buffered']
    #allocation3 [shape = 's32[1]{0}', space=sflag, size = 0x4, scoped, tag = 'scoped memory for linear_attention.1']
    %9 = vsyncpa [#allocation3], 0
    // Predicated region
    $region2: #{linear_attention.1} parent=1 // pred_check
      _
    $region3: #{linear_attention.1} parent=1 // pred_check_branch
      %11 = sbr.rel (0) target = $region5
    $region4: #{linear_attention.1} parent=1 // pred_region
      _
    $region5: #{linear_attention.1} parent=1 // pred_fallthru
      _
    // Predicated region
    $region6: #{linear_attention.1} parent=1 // pred_check
      _
    $region7: #{linear_attention.1} parent=1 // pred_check_branch
      %13 = sbr.rel (0) target = $region9
    $region8: #{linear_attention.1} parent=1 // pred_region
      _
    $region9: #{linear_attention.1} parent=1 // pred_fallthru
      _
    // Predicated region
    $region10: #{linear_attention.1} parent=1 // pred_check
      _
    $region11: #{linear_attention.1} parent=1 // pred_check_branch
      %15 = sbr.rel (0) target = $region13
    $region12: #{linear_attention.1} parent=1 // pred_region
      _
    $region13: #{linear_attention.1} parent=1 // pred_fallthru
      _
    // Predicated region
    $region14: #{linear_attention.1} parent=1 // pred_check
      _
    $region15: #{linear_attention.1} parent=1 // pred_check_branch
      %17 = sbr.rel (0) target = $region17
    $region16: #{linear_attention.1} parent=1 // pred_region
      _
    $region17: #{linear_attention.1} parent=1 // pred_fallthru
      _
    %v18 = vld [vmem:[%s0] sm:$0xff]
    %v19 = vld [vmem:[%s0 + $0x8] sm:$0xff]
    %v20 = vld [vmem:[%s0 + $0x10] sm:$0x3]
    %v21 = vld [vmem:[%s1] sm:$0xff]
    %v22 = vld [vmem:[%s1 + $0x8] sm:$0xff]
    %v23 = vld [vmem:[%s1 + $0x10] sm:$0xff]
    %v24 = vld [vmem:[%s1 + $0x18] sm:$0xff]
    %v25 = vld [vmem:[%s2] sm:$0x1]
    %v27 = vlaneseq
    %v28 = vshrl.u32 %v27, 7
    %v29 = vsub.s32 0, %v28
    %v30 = vrot.slane %v25, %v29
    %vm32 = vcmask 261120
    %v34 = vsel %vm32, %v18, 0
    %v37 = vsel %vm32, %v19, 0
    %v40 = vsel %vm32, %v20, 0
    %v43 = vsel %vm32, %v21, 0
    %v46 = vsel %vm32, %v22, 0
    %v49 = vsel %vm32, %v23, 0
    %v52 = vsel %vm32, %v24, 0
    %54 = vmatprep.subr.mxu0 0.0
    %55 = vmatpush1.xpose.msra.mxu0 %v43
    %56 = vmatprep.subr.mxu0 0.0
    %57 = vmatpush1.xpose.msra.mxu0 %v46
    %58 = vmatprep.subr.mxu0 0.0
    %59 = vmatpush1.xpose.msra.mxu0 %v49
    %60 = vmatprep.subr.mxu0 0.0
    %61 = vmatpush1.xpose.msra.mxu0 %v52
    %62 = vmatprep.subr.mxu0 0.0
    %63 = vmatpush1.xpose.msra.mxu0 0.0
    %64 = vmatprep.subr.mxu0 0.0
    %65 = vmatpush1.xpose.msra.mxu0 0.0
    %66 = vmatprep.subr.mxu0 0.0
    %67 = vmatpush1.xpose.msra.mxu0 0.0
    %68 = vmatprep.subr.mxu0 0.0
    %69 = vmatpush1.xpose.msra.mxu0 0.0
    %70 = vmatprep.subr.mxu0 0.0
    %71 = vmatpush1.xpose.msra.mxu0 0.0
    %72 = vmatprep.subr.mxu0 0.0
    %73 = vmatpush1.xpose.msra.mxu0 0.0
    %74 = vmatprep.subr.mxu0 0.0
    %75 = vmatpush1.xpose.msra.mxu0 0.0
    %76 = vmatprep.subr.mxu0 0.0
    %77 = vmatpush1.xpose.msra.mxu0 0.0
    %78 = vmatprep.subr.mxu0 0.0
    %79 = vmatpush1.xpose.msra.mxu0 0.0
    %80 = vmatprep.subr.mxu0 0.0
    %81 = vmatpush1.xpose.msra.mxu0 0.0
    %82 = vmatprep.subr.mxu0 0.0
    %83 = vmatpush1.xpose.msra.mxu0 0.0
    %84 = vmatprep.subr.mxu0 0.0
    %85 = vmatpush1.xpose.msra.mxu0 0.0
    %86 = vmatprep.subr.mxu0 0.0
    %87 = vmatpush1.xpose.msra.mxu0 0.0
    %88 = vmatprep.subr.mxu0 0.0
    %89 = vmatpush1.xpose.msra.mxu0 0.0
    %90 = vmatprep.subr.mxu0 0.0
    %91 = vmatpush1.xpose.msra.mxu0 0.0
    %92 = vmatprep.subr.mxu0 0.0
    %93 = vmatpush1.xpose.msra.mxu0 0.0
    %94 = vmatprep.subr.mxu0 0.0
    %95 = vmatpush1.xpose.msra.mxu0 0.0
    %96 = vmatprep.subr.mxu0 0.0
    %97 = vmatpush1.xpose.msra.mxu0 0.0
    %98 = vmatprep.subr.mxu0 0.0
    %99 = vmatpush1.xpose.msra.mxu0 0.0
    %100 = vmatprep.subr.mxu0 0.0
    %101 = vmatpush1.xpose.msra.mxu0 0.0
    %102 = vmatprep.subr.mxu0 0.0
    %103 = vmatpush1.xpose.msra.mxu0 0.0
    %104 = vmatprep.subr.mxu0 0.0
    %105 = vmatpush1.xpose.msra.mxu0 0.0
    %106 = vmatprep.subr.mxu0 0.0
    %107 = vmatpush1.xpose.msra.mxu0 0.0
    %108 = vmatprep.subr.mxu0 0.0
    %109 = vmatpush1.xpose.msra.mxu0 0.0
    %110 = vmatprep.subr.mxu0 0.0
    %111 = vmatpush1.xpose.msra.mxu0 0.0
    %112 = vmatprep.subr.mxu0 0.0
    %113 = vmatpush1.xpose.msra.mxu0 0.0
    %114 = vmatprep.subr.mxu0 0.0
    %115 = vmatpush1.xpose.msra.mxu0 0.0
    %116 = vmatprep.subr.mxu0 0.0
    %117 = vmatpush1.xpose.msra.mxu0 0.0
    %118 = vmatprep.mubr.f32.mxu0 0.0
    %119 = vmatmul.mubr.f32.gmra.mrb[0].mxu0 %v34
    %v120 = vpop.f32.mrb[0].mxu0
    %v121 = vadd.f32 %v30, %v120
    %v122 = vpop.f32.mrb[0].mxu0
    %123 = vmatprep.mubr.f32.mxu0 0.0
    %124 = vmatmul.mubr.f32.gmra.mrb[0].mxu0 %v37
    %v125 = vpop.f32.mrb[0].mxu0
    %v126 = vadd.f32 %v30, %v125
    %v127 = vpop.f32.mrb[0].mxu0
    %128 = vmatprep.mubr.f32.mxu0 0.0
    %129 = vmatmul.mubr.f32.gmra.mrb[0].mxu0 %v40
    %v130 = vpop.f32.mrb[0].mxu0
    %v131 = vadd.f32 %v30, %v130
    %v132 = vpop.f32.mrb[0].mxu0
    %133 = vdwg.mxu0
    %v134 = vmax.f32 %v121, 0.0
    %v135 = vmax.f32 %v126, 0.0
    %v136 = vmax.f32 %v131, 0.0
    %v139 = vunpack.c.l.s4 1966171168
    %v140 = vunpack.c.0.s8 %v139
    %v141 = vlaneseq
    %v142 = vshrl.u32 %v141, 7
    %v143 = vsub.s32 %v140, %v142
    %v144 = vrot.slane %v136, %v143
    %v145 = vcombine.high %v144, %v144
    %v147 = vunpack.c.l.s4 1966171168
    %v148 = vunpack.c.0.s8 %v147
    %v149 = vlaneseq
    %v150 = vshrl.u32 %v149, 7
    %v151 = vsub.s32 %v148, %v150
    %v152 = vrot.slane %v144, %v151
    %v154 = vunpack.c.l.s4 1966171168
    %v155 = vunpack.c.0.s8 %v154
    %v156 = vlaneseq
    %v157 = vshrl.u32 %v156, 7
    %v158 = vsub.s32 %v155, %v157
    %v159 = vrot.slane %v145, %v158
    %v160 = vsel %vm32, %v152, 0
    %v163 = vsel %vm32, %v134, 0
    %165 = vmatprep.subr.mxu0 0.0
    %166 = vmatpush1.xpose.msra.mxu0 %v163
    %167 = vmatprep.subr.mxu0 0.0
    %168 = vmatpush1.xpose.msra.mxu0 0.0
    %169 = vmatprep.subr.mxu0 0.0
    %170 = vmatpush1.xpose.msra.mxu0 0.0
    %171 = vmatprep.subr.mxu0 0.0
    %172 = vmatpush1.xpose.msra.mxu0 0.0
    %173 = vmatprep.subr.mxu0 0.0
    %174 = vmatpush1.xpose.msra.mxu0 0.0
    %175 = vmatprep.subr.mxu0 0.0
    %176 = vmatpush1.xpose.msra.mxu0 0.0
    %177 = vmatprep.subr.mxu0 0.0
    %178 = vmatpush1.xpose.msra.mxu0 0.0
    %179 = vmatprep.subr.mxu0 0.0
    %180 = vmatpush1.xpose.msra.mxu0 0.0
    %181 = vmatprep.subr.mxu0 0.0
    %182 = vmatpush1.xpose.msra.mxu0 0.0
    %183 = vmatprep.subr.mxu0 0.0
    %184 = vmatpush1.xpose.msra.mxu0 0.0
    %185 = vmatprep.subr.mxu0 0.0
    %186 = vmatpush1.xpose.msra.mxu0 0.0
    %187 = vmatprep.subr.mxu0 0.0
    %188 = vmatpush1.xpose.msra.mxu0 0.0
    %189 = vmatprep.subr.mxu0 0.0
    %190 = vmatpush1.xpose.msra.mxu0 0.0
    %191 = vmatprep.subr.mxu0 0.0
    %192 = vmatpush1.xpose.msra.mxu0 0.0
    %193 = vmatprep.subr.mxu0 0.0
    %194 = vmatpush1.xpose.msra.mxu0 0.0
    %195 = vmatprep.subr.mxu0 0.0
    %196 = vmatpush1.xpose.msra.mxu0 0.0
    %197 = vmatprep.subr.mxu0 0.0
    %198 = vmatpush1.xpose.msra.mxu0 0.0
    %199 = vmatprep.subr.mxu0 0.0
    %200 = vmatpush1.xpose.msra.mxu0 0.0
    %201 = vmatprep.subr.mxu0 0.0
    %202 = vmatpush1.xpose.msra.mxu0 0.0
    %203 = vmatprep.subr.mxu0 0.0
    %204 = vmatpush1.xpose.msra.mxu0 0.0
    %205 = vmatprep.subr.mxu0 0.0
    %206 = vmatpush1.xpose.msra.mxu0 0.0
    %207 = vmatprep.subr.mxu0 0.0
    %208 = vmatpush1.xpose.msra.mxu0 0.0
    %209 = vmatprep.subr.mxu0 0.0
    %210 = vmatpush1.xpose.msra.mxu0 0.0
    %211 = vmatprep.subr.mxu0 0.0
    %212 = vmatpush1.xpose.msra.mxu0 0.0
    %213 = vmatprep.subr.mxu0 0.0
    %214 = vmatpush1.xpose.msra.mxu0 0.0
    %215 = vmatprep.subr.mxu0 0.0
    %216 = vmatpush1.xpose.msra.mxu0 0.0
    %217 = vmatprep.subr.mxu0 0.0
    %218 = vmatpush1.xpose.msra.mxu0 0.0
    %219 = vmatprep.subr.mxu0 0.0
    %220 = vmatpush1.xpose.msra.mxu0 0.0
    %221 = vmatprep.subr.mxu0 0.0
    %222 = vmatpush1.xpose.msra.mxu0 0.0
    %223 = vmatprep.subr.mxu0 0.0
    %224 = vmatpush1.xpose.msra.mxu0 0.0
    %225 = vmatprep.subr.mxu0 0.0
    %226 = vmatpush1.xpose.msra.mxu0 0.0
    %227 = vmatprep.subr.mxu0 0.0
    %228 = vmatpush1.xpose.msra.mxu0 0.0
    %229 = vmatprep.mubr.f32.mxu0 0.0
    %230 = vmatmul.mubr.f32.gmra.mrb[0].mxu0 %v160
    %v231 = vpop.f32.mrb[0].mxu0
    %v232 = vadd.f32 0.0, %v231
    %v233 = vpop.f32.mrb[0].mxu0
    %234 = vdwg.mxu0
    %v235 = vsel %vm32, %v159, 0
    %v238 = vsel %vm32, %v135, 0
    %240 = vmatprep.subr.mxu0 0.0
    %241 = vmatpush1.xpose.msra.mxu0 %v238
    %242 = vmatprep.subr.mxu0 0.0
    %243 = vmatpush1.xpose.msra.mxu0 0.0
    %244 = vmatprep.subr.mxu0 0.0
    %245 = vmatpush1.xpose.msra.mxu0 0.0
    %246 = vmatprep.subr.mxu0 0.0
    %247 = vmatpush1.xpose.msra.mxu0 0.0
    %248 = vmatprep.subr.mxu0 0.0
    %249 = vmatpush1.xpose.msra.mxu0 0.0
    %250 = vmatprep.subr.mxu0 0.0
    %251 = vmatpush1.xpose.msra.mxu0 0.0
    %252 = vmatprep.subr.mxu0 0.0
    %253 = vmatpush1.xpose.msra.mxu0 0.0
    %254 = vmatprep.subr.mxu0 0.0
    %255 = vmatpush1.xpose.msra.mxu0 0.0
    %256 = vmatprep.subr.mxu0 0.0
    %257 = vmatpush1.xpose.msra.mxu0 0.0
    %258 = vmatprep.subr.mxu0 0.0
    %259 = vmatpush1.xpose.msra.mxu0 0.0
    %260 = vmatprep.subr.mxu0 0.0
    %261 = vmatpush1.xpose.msra.mxu0 0.0
    %262 = vmatprep.subr.mxu0 0.0
    %263 = vmatpush1.xpose.msra.mxu0 0.0
    %264 = vmatprep.subr.mxu0 0.0
    %265 = vmatpush1.xpose.msra.mxu0 0.0
    %266 = vmatprep.subr.mxu0 0.0
    %267 = vmatpush1.xpose.msra.mxu0 0.0
    %268 = vmatprep.subr.mxu0 0.0
    %269 = vmatpush1.xpose.msra.mxu0 0.0
    %270 = vmatprep.subr.mxu0 0.0
    %271 = vmatpush1.xpose.msra.mxu0 0.0
    %272 = vmatprep.subr.mxu0 0.0
    %273 = vmatpush1.xpose.msra.mxu0 0.0
    %274 = vmatprep.subr.mxu0 0.0
    %275 = vmatpush1.xpose.msra.mxu0 0.0
    %276 = vmatprep.subr.mxu0 0.0
    %277 = vmatpush1.xpose.msra.mxu0 0.0
    %278 = vmatprep.subr.mxu0 0.0
    %279 = vmatpush1.xpose.msra.mxu0 0.0
    %280 = vmatprep.subr.mxu0 0.0
    %281 = vmatpush1.xpose.msra.mxu0 0.0
    %282 = vmatprep.subr.mxu0 0.0
    %283 = vmatpush1.xpose.msra.mxu0 0.0
    %284 = vmatprep.subr.mxu0 0.0
    %285 = vmatpush1.xpose.msra.mxu0 0.0
    %286 = vmatprep.subr.mxu0 0.0
    %287 = vmatpush1.xpose.msra.mxu0 0.0
    %288 = vmatprep.subr.mxu0 0.0
    %289 = vmatpush1.xpose.msra.mxu0 0.0
    %290 = vmatprep.subr.mxu0 0.0
    %291 = vmatpush1.xpose.msra.mxu0 0.0
    %292 = vmatprep.subr.mxu0 0.0
    %293 = vmatpush1.xpose.msra.mxu0 0.0
    %294 = vmatprep.subr.mxu0 0.0
    %295 = vmatpush1.xpose.msra.mxu0 0.0
    %296 = vmatprep.subr.mxu0 0.0
    %297 = vmatpush1.xpose.msra.mxu0 0.0
    %298 = vmatprep.subr.mxu0 0.0
    %299 = vmatpush1.xpose.msra.mxu0 0.0
    %300 = vmatprep.subr.mxu0 0.0
    %301 = vmatpush1.xpose.msra.mxu0 0.0
    %302 = vmatprep.subr.mxu0 0.0
    %303 = vmatpush1.xpose.msra.mxu0 0.0
    %304 = vmatprep.mubr.f32.mxu0 0.0
    %305 = vmatmul.mubr.f32.gmra.mrb[0].mxu0 %v235
    %v306 = vpop.f32.mrb[0].mxu0
    %v307 = vadd.f32 0.0, %v306
    %v308 = vpop.f32.mrb[0].mxu0
    %309 = vdwg.mxu0
    %v310 = vld [vmem:[%s3] sm:$0x1]
    %v311 = vld [vmem:[%s3 + $0x1] sm:$0x1]
    %vm312 = vcmp.ge.f32.partialorder %v310, 0.1
    %vm313 = vcmp.ge.f32.partialorder %v311, 0.1
    %v314 = vmul.f32 %v232, 1.1111112
    %v315 = vmul.f32 %v307, 1.1111112
    %v316 = vsel %vm312, %v314, 0.0
    %v317 = vsel %vm313, %v315, 0.0
    %s318 = scalar_lea.vmem %s3, 2
    %v319 = vld [vmem:[%s318] sm:$0x1]
    %v320 = vld [vmem:[%s318 + $0x1] sm:$0x1]
    %v321 = vmax.f32 %v319, 1e-09
    %v322 = vmax.f32 %v320, 1e-09
    %v323 = vlog2.pop %v321
    %v324 = vmul.f32 %v323, 0.6931472
    %v325 = vlog2.pop %v322
    %v326 = vmul.f32 %v325, 0.6931472
    %v327 = vsub.f32 0.0, %v324
    %v328 = vsub.f32 0.0, %v326
    %v329 = vlog2.pop %v327
    %v330 = vmul.f32 %v329, 0.6931472
    %v331 = vlog2.pop %v328
    %v332 = vmul.f32 %v331, 0.6931472
    %v333 = vsub.f32 0.0, %v330
    %v334 = vsub.f32 0.0, %v332
    %v335 = vadd.f32 %v316, %v333
    %v336 = vadd.f32 %v317, %v334
    %vm337 = vcmask 57344
    %v338 = vsel %vm337, %v335, -inf
    %339 = vmax.xlane.f32.xlu0 %v338
    %v340 = vpop.xlane.xlu0 %339
    %v341 = vsel %vm337, %v336, -inf
    %342 = vmax.xlane.f32.xlu0 %v341
    %v343 = vpop.xlane.xlu0 %342
    %v344 = vsub.f32 %v335, %v340
    %v345 = vsub.f32 %v336, %v343
    %v346 = vmul.f32 %v344, 1.442695
    %v347 = vpow.pop %v346
    %v348 = vmul.f32 %v345, 1.442695
    %v349 = vpow.pop %v348
    %v350 = vsel %vm337, %v347, 0.0
    %351 = vadd.xlane.f32.xlu0 %v350
    %v352 = vpop.xlane.xlu0 %351
    %v353 = vsel %vm337, %v349, 0.0
    %354 = vadd.xlane.f32.xlu0 %v353
    %v355 = vpop.xlane.xlu0 %354
    %v356 = vrcp.pop %v352
    %v357 = vmul.f32 %v347, %v356
    %v358 = vrcp.pop %v355
    %v359 = vmul.f32 %v349, %v358
    %360 = vst.msk [vmem:[#allocation2] sm:$0x1] %vm337, %v357
    %361 = vst.msk [vmem:[#allocation2 + $0x1] sm:$0x1] %vm337, %v359
    // Predicated region
    $region18: #{linear_attention.1} parent=1 // pred_check
      _
    $region19: #{linear_attention.1} parent=1 // pred_check_branch
      %363 = sbr.rel (0) target = $region21
    $region20: #{linear_attention.1} parent=1 // pred_region
      %s365 = ssub.s32 32, 32
      %366 = vsyncadd [#allocation3], %s365
      %s367 = sshll.u32 [#allocation2], 4
      %s368 = int_to_ptr.vmem [resolvable:$true] %s367
      %373 = dma.vmem_to_hbm [thread:$0]  %s368, 32, %s4, [#allocation3], 16, 16, 1
    $region21: #{linear_attention.1} parent=1 // pred_fallthru
      _
    // Predicated region
    $region22: #{linear_attention.1} parent=1 // pred_check
      _
    $region23: #{linear_attention.1} parent=1 // pred_check_branch
      %375 = sbr.rel (0) target = $region25
    $region24: #{linear_attention.1} parent=1 // pred_region
      %376 = dma.done [#allocation3], 32
    $region25: #{linear_attention.1} parent=1 // pred_fallthru
      _
    %377 = vsyncpa [#allocation3], 1

</llo_original>
